<compile_context>
chip_gen: v6e
topology: v6e:2x2x1
jax: 0.10.0
libtpu: 0.0.40
codegen_flags: <defaults>
</compile_context>

<pallas_src>
import numpy as np
import jax
import jax.numpy as jnp
from jax.experimental import pallas as pl
from jax.experimental.pallas import tpu as pltpu

# ---- model hyper-parameters (from the PyTorch module) ----------------------
CLAMP_MIN = 3.0
CLAMP_MAX = 4.0
C_IN, C_OUT, KH, KW = 1, 2, 9, 9
STRIDE, PAD = 4, 1
FC_IN, FC_OUT = 20, 40


# ---- Pallas kernel: single fused GEMM + bias + clamp -----------------------
def fused_kernel(x_ref, w_ref, b_ref, o_ref):
    y = jnp.dot(x_ref[...], w_ref[...], preferred_element_type=jnp.float32)
    y = y + b_ref[...]
    o_ref[...] = jnp.minimum(jnp.maximum(y, CLAMP_MIN), CLAMP_MAX)


# ---- one-time host-side weight composition ---------------------------------
def build_fused_params(conv_w, conv_b, fc_w, fc_b, H, W):
    """Fold conv (as im2col selection) + NCHW flatten + Linear into a single
    affine map.  Runs once at init (pure numpy); returns jnp constants."""
    conv_w = np.asarray(conv_w, dtype=np.float32)
    conv_b = np.asarray(conv_b, dtype=np.float32)
    fc_w = np.asarray(fc_w, dtype=np.float32)
    fc_b = np.asarray(fc_b, dtype=np.float32)

    OH = (H + 2 * PAD - KH) // STRIDE + 1
    OW = (W + 2 * PAD - KW) // STRIDE + 1
    P = OH * OW
    assert C_OUT * P == FC_IN, "conv flatten size must match Linear in_features"

    # A maps the flattened (H*W,) image to the flattened conv output (C_OUT*P,)
    # with PyTorch's channel-major flatten order f = c*P + oh*OW + ow.
    A = np.zeros((H * W, C_OUT * P), dtype=np.float32)
    for c in range(C_OUT):
        for oh in range(OH):
            for ow in range(OW):
                f = c * P + oh * OW + ow
                for kh in range(KH):
                    i = oh * STRIDE + kh - PAD
                    if not (0 <= i < H):
                        continue
                    for kw in range(KW):
                        j = ow * STRIDE + kw - PAD
                        if 0 <= j < W:
                            A[i * W + j, f] = conv_w[c, 0, kh, kw]
    b1 = np.repeat(conv_b, P)[None, :]                 # (1, C_OUT*P)

    W_total = A @ fc_w.T                               # (H*W, FC_OUT)
    b_total = b1 @ fc_w.T + fc_b[None, :]              # (1, FC_OUT)
    return jnp.asarray(W_total), jnp.asarray(b_total)


# ---- forward: reshape + one pallas_call -------------------------------------
def make_forward(W_total, b_total, H, W):
    D = H * W

    @jax.jit
    def forward(x):
        n = x.shape[0]
        x2d = x.reshape(n, D).astype(jnp.float32)
        tb = n if n <= 128 else 128                    # batch tile
        return pl.pallas_call(
            fused_kernel,
            out_shape=jax.ShapeDtypeStruct((n, FC_OUT), jnp.float32),
            grid=(pl.cdiv(n, tb),),
            in_specs=[
                pl.BlockSpec((tb, D), lambda i: (i, 0)),
                pl.BlockSpec((D, FC_OUT), lambda i: (0, 0)),
                pl.BlockSpec((1, FC_OUT), lambda i: (0, 0)),
            ],
            out_specs=pl.BlockSpec((tb, FC_OUT), lambda i: (i, 0)),
            compiler_params=pltpu.CompilerParams(
                dimension_semantics=("parallel",)),
        )(x2d, W_total, b_total)

    return forward


# ---- pure-JAX reference (for correctness verification) ---------------------
def reference(x, conv_w, conv_b, fc_w, fc_b):
    v1 = jax.lax.conv_general_dilated(
        x, conv_w, window_strides=(STRIDE, STRIDE),
        padding=((PAD, PAD), (PAD, PAD)),
        dimension_numbers=("NCHW", "OIHW", "NCHW"))
    v1 = v1 + conv_b.reshape(1, C_OUT, 1, 1)
    v2 = v1.reshape(v1.shape[0], -1)
    v3 = v2 @ fc_w.T + fc_b
    v4 = jnp.maximum(v3, CLAMP_MIN)
    return jnp.minimum(v4, CLAMP_MAX)


if __name__ == "__main__":
    key = jax.random.PRNGKey(0)
    k1, k2, k3, k4, k5 = jax.random.split(key, 5)

    N, H, W = 2, 12, 24   # conv -> (N, 2, 2, 5) -> flatten 20 -> Linear(20, 40)
    x = jax.random.normal(k1, (N, C_IN, H, W), jnp.float32)

    fan_conv = C_IN * KH * KW
    conv_w = jax.random.uniform(k2, (C_OUT, C_IN, KH, KW), jnp.float32,
                                -1.0, 1.0) / np.sqrt(fan_conv)
    conv_b = jax.random.uniform(k3, (C_OUT,), jnp.float32,
                                -1.0, 1.0) / np.sqrt(fan_conv)
    fc_w = jax.random.uniform(k4, (FC_OUT, FC_IN), jnp.float32,
                              -1.0, 1.0) / np.sqrt(FC_IN)
    fc_b = jax.random.uniform(k5, (FC_OUT,), jnp.float32,
                              -1.0, 1.0) / np.sqrt(FC_IN)

    # one-time composition of all weights (hoisted out of the forward path)
    W_total, b_total = build_fused_params(conv_w, conv_b, fc_w, fc_b, H, W)
    forward = make_forward(W_total, b_total, H, W)

    out = jax.block_until_ready(forward(x))

    ref = reference(x, conv_w, conv_b, fc_w, fc_b)
    assert out.shape == (N, FC_OUT)
    np.testing.assert_allclose(np.asarray(out), np.asarray(ref),
                               rtol=1e-4, atol=1e-4)
    print("KERNEL_OK")
</pallas_src>

<mosaic_0001>
module attributes {stable_mosaic.version = 11 : i64} {
  func.func @fused_kernel(%arg0: i32, %arg1: memref<2x288xf32, #tpu.memory_space<vmem>>, %arg2: memref<288x40xf32, #tpu.memory_space<vmem>>, %arg3: memref<1x40xf32, #tpu.memory_space<vmem>>, %arg4: memref<2x40xf32, #tpu.memory_space<vmem>>) attributes {dimension_semantics = [#tpu.dimension_semantics<parallel>], iteration_bounds = array<i64: 1>, scalar_prefetch = 0 : i64, scratch_operands = 0 : i64, tpu.core_type = #tpu.core_type<tc>, window_params = [{transform_indices = @transform_0, window_bounds = array<i64: 2, 288>}, {pipeline_mode = #tpu.pipeline_mode<synchronous>, transform_indices = @transform_1, window_bounds = array<i64: 288, 40>}, {pipeline_mode = #tpu.pipeline_mode<synchronous>, transform_indices = @transform_2, window_bounds = array<i64: 1, 40>}, {transform_indices = @transform_3, window_bounds = array<i64: 2, 40>}]} {
    %c0 = arith.constant 0 : index
    %c0_0 = arith.constant 0 : index
    %0 = vector.load %arg1[%c0, %c0_0] : memref<2x288xf32, #tpu.memory_space<vmem>>, vector<2x288xf32>
    %c0_1 = arith.constant 0 : index
    %c0_2 = arith.constant 0 : index
    %1 = vector.load %arg2[%c0_1, %c0_2] : memref<288x40xf32, #tpu.memory_space<vmem>>, vector<288x40xf32>
    %cst = arith.constant dense<0.000000e+00> : vector<2x40xf32>
    %2 = tpu.matmul %0, %1, %cst {dimension_numbers = #tpu.dot_dimension_numbers<[1], [0], [0], [1], [0, 0, 1, 1], [], []>} : vector<2x288xf32>, vector<288x40xf32>, vector<2x40xf32> -> vector<2x40xf32>
    %c0_3 = arith.constant 0 : index
    %c0_4 = arith.constant 0 : index
    %3 = vector.load %arg3[%c0_3, %c0_4] : memref<1x40xf32, #tpu.memory_space<vmem>>, vector<1x40xf32>
    %4 = vector.broadcast %3 : vector<1x40xf32> to vector<2x40xf32>
    %5 = arith.addf %2, %4 : vector<2x40xf32>
    %cst_5 = arith.constant 3.000000e+00 : f32
    %6 = vector.broadcast %cst_5 : f32 to vector<2x40xf32>
    %7 = arith.maximumf %5, %6 : vector<2x40xf32>
    %cst_6 = arith.constant 4.000000e+00 : f32
    %8 = vector.broadcast %cst_6 : f32 to vector<2x40xf32>
    %9 = arith.minimumf %7, %8 : vector<2x40xf32>
    %c0_7 = arith.constant 0 : index
    %c0_8 = arith.constant 0 : index
    %10 = vector.load %arg4[%c0_7, %c0_8] : memref<2x40xf32, #tpu.memory_space<vmem>>, vector<2x40xf32>
    tpu.vector_store %arg4[%c0_7, %c0_8], %9 {strides = array<i32>} : memref<2x40xf32, #tpu.memory_space<vmem>>, vector<2x40xf32>,
    return
  }
  func.func @transform_0(%arg0: i32) -> (i32, i32) {
    %c0_i32 = arith.constant 0 : i32
    %c0_i32_0 = arith.constant 0 : i32
    return %arg0, %c0_i32 : i32, i32
  }
  func.func @transform_1(%arg0: i32) -> (i32, i32) {
    %c0_i32 = arith.constant 0 : i32
    %c0_i32_0 = arith.constant 0 : i32
    %c0_i32_1 = arith.constant 0 : i32
    return %c0_i32, %c0_i32_0 : i32, i32
  }
  func.func @transform_2(%arg0: i32) -> (i32, i32) {
    %c0_i32 = arith.constant 0 : i32
    %c0_i32_0 = arith.constant 0 : i32
    %c0_i32_1 = arith.constant 0 : i32
    return %c0_i32, %c0_i32_0 : i32, i32
  }
  func.func @transform_3(%arg0: i32) -> (i32, i32) {
    %c0_i32 = arith.constant 0 : i32
    %c0_i32_0 = arith.constant 0 : i32
    return %arg0, %c0_i32 : i32, i32
  }
}

</mosaic_0001>

<llo_original>
// kernel: forward.1
$region0: #{forward.1}
  #allocation0 [shape = 'u32[]', space=smem, size = 0x4, offset = 0x4, fixed_abs, tag = 'smem constant byte address 0x4 - core index']
  #allocation1 [shape = 'u32[144,128]{1,0:T(1,128)}', space=vmem, size = 0x12000, scoped, tag = 'internal scratch']
  %s0 = inlined_call_operand.vmem [shape: f32[2,288], index: 0, kind: input, shape index: {}]
  %s1 = inlined_call_operand.hbm [shape: f32[288,40], index: 1, kind: input, shape index: {}]
  %s2 = inlined_call_operand.vmem [shape: f32[1,40], index: 2, kind: input, shape index: {}]
  %s3 = inlined_call_operand.hbm [shape: f32[2,40], index: 3, kind: output, shape index: {}]
  %s4 = sld [smem:[#allocation0]]
  $region26: #{forward.1} parent=0
    _
  %s6 = ssub.s32 1, %s4
  %s7 = scalar_select 0, %s6, %s4
  $region1: #{forward.1} parent=0
    #allocation2 [shape = 'u8[147456]{0}', space=vmem, size = 0x24000, scoped, tag = 'input window, operand 1, single buffered']
    #allocation3 [shape = 's32[1]{0}', space=sflag, size = 0x4, scoped, tag = 'scoped memory for forward.1']
    #allocation4 [shape = 's32[1]{0}', space=sflag, size = 0x4, scoped, tag = 'scoped memory for forward.1']
    #allocation5 [shape = 'u8[1024]{0}', space=vmem, size = 0x400, scoped, tag = 'output window, operand 0, single buffered']
    %8 = vsyncpa [#allocation3], 0
    %9 = vsyncpa [#allocation4], 0
    // Predicated region
    $region2: #{forward.1} parent=1 // pred_check
      _
    $region3: #{forward.1} parent=1 // pred_check_branch
      %11 = sbr.rel (0) target = $region5
    $region4: #{forward.1} parent=1 // pred_region
      _
    $region5: #{forward.1} parent=1 // pred_fallthru
      _
    // Predicated region
    $region6: #{forward.1} parent=1 // pred_check
      _
    $region7: #{forward.1} parent=1 // pred_check_branch
      %13 = sbr.rel (0) target = $region9
    $region8: #{forward.1} parent=1 // pred_region
      %s15 = ssub.s32 4608, 4608
      %16 = vsyncadd [#allocation3], %s15
      %s17 = sshll.u32 [#allocation2], 4
      %s18 = int_to_ptr.vmem [resolvable:$true] %s17
      %23 = dma.hbm_to_vmem [thread:$0]  %s1, 4608, %s18, [#allocation3], 128, 128, 8
    $region9: #{forward.1} parent=1 // pred_fallthru
      _
    // Predicated region
    $region10: #{forward.1} parent=1 // pred_check
      _
    $region11: #{forward.1} parent=1 // pred_check_branch
      %25 = sbr.rel (0) target = $region13
    $region12: #{forward.1} parent=1 // pred_region
      _
    $region13: #{forward.1} parent=1 // pred_fallthru
      _
    // Predicated region
    $region14: #{forward.1} parent=1 // pred_check
      _
    $region15: #{forward.1} parent=1 // pred_check_branch
      %27 = sbr.rel (0) target = $region17
    $region16: #{forward.1} parent=1 // pred_region
      %28 = dma.done [#allocation3], 4608
    $region17: #{forward.1} parent=1 // pred_fallthru
      _
    %v29 = vld [vmem:[%s0] sm:$0x3f]
    %v30 = vld [vmem:[#allocation2] sm:$0xff]
    %v31 = vld [vmem:[#allocation2 + $0x8] sm:$0xff]
    %v32 = vld [vmem:[#allocation2 + $0x10] sm:$0xff]
    %v33 = vld [vmem:[#allocation2 + $0x18] sm:$0xff]
    %v34 = vld [vmem:[#allocation2 + $0x20] sm:$0xff]
    %v35 = vld [vmem:[#allocation2 + $0x28] sm:$0xff]
    %v36 = vld [vmem:[#allocation2 + $0x30] sm:$0xff]
    %v37 = vld [vmem:[#allocation2 + $0x38] sm:$0xff]
    %v38 = vld [vmem:[#allocation2 + $0x40] sm:$0xff]
    %v39 = vld [vmem:[#allocation2 + $0x48] sm:$0xff]
    %v40 = vld [vmem:[#allocation2 + $0x50] sm:$0xff]
    %v41 = vld [vmem:[#allocation2 + $0x58] sm:$0xff]
    %v42 = vld [vmem:[#allocation2 + $0x60] sm:$0xff]
    %v43 = vld [vmem:[#allocation2 + $0x68] sm:$0xff]
    %v44 = vld [vmem:[#allocation2 + $0x70] sm:$0xff]
    %v45 = vld [vmem:[#allocation2 + $0x78] sm:$0xff]
    %v46 = vld [vmem:[#allocation2 + $0x80] sm:$0xff]
    %v47 = vld [vmem:[#allocation2 + $0x88] sm:$0xff]
    %v48 = vld [vmem:[#allocation2 + $0x90] sm:$0xff]
    %v49 = vld [vmem:[#allocation2 + $0x98] sm:$0xff]
    %v50 = vld [vmem:[#allocation2 + $0xa0] sm:$0xff]
    %v51 = vld [vmem:[#allocation2 + $0xa8] sm:$0xff]
    %v52 = vld [vmem:[#allocation2 + $0xb0] sm:$0xff]
    %v53 = vld [vmem:[#allocation2 + $0xb8] sm:$0xff]
    %v54 = vld [vmem:[#allocation2 + $0xc0] sm:$0xff]
    %v55 = vld [vmem:[#allocation2 + $0xc8] sm:$0xff]
    %v56 = vld [vmem:[#allocation2 + $0xd0] sm:$0xff]
    %v57 = vld [vmem:[#allocation2 + $0xd8] sm:$0xff]
    %v58 = vld [vmem:[#allocation2 + $0xe0] sm:$0xff]
    %v59 = vld [vmem:[#allocation2 + $0xe8] sm:$0xff]
    %v60 = vld [vmem:[#allocation2 + $0xf0] sm:$0xff]
    %v61 = vld [vmem:[#allocation2 + $0xf8] sm:$0xff]
    %v62 = vld [vmem:[#allocation2 + $0x100] sm:$0xff]
    %v63 = vld [vmem:[#allocation2 + $0x108] sm:$0xff]
    %v64 = vld [vmem:[#allocation2 + $0x110] sm:$0xff]
    %v65 = vld [vmem:[#allocation2 + $0x118] sm:$0xff]
    %v66 = vld [vmem:[%s2] sm:$0x1]
    %v68 = vlaneseq
    %v69 = vshrl.u32 %v68, 7
    %v70 = vsub.s32 0, %v69
    %v71 = vrot.slane %v66, %v70
    %v74 = vcombine.high %v29, %v29
    %v76 = vunpack.c.l.s4 1983009808
    %v77 = vunpack.c.0.s8 %v76
    %v78 = vlaneseq
    %v79 = vshrl.u32 %v78, 7
    %v80 = vsub.s32 %v77, %v79
    %v81 = vrot.slane %v29, %v80
    %v83 = vunpack.c.l.s4 1983009808
    %v84 = vunpack.c.0.s8 %v83
    %v85 = vlaneseq
    %v86 = vshrl.u32 %v85, 7
    %v87 = vsub.s32 %v84, %v86
    %v88 = vrot.slane %v74, %v87
    %v89 = vcombine.high %v81, %v81
    %vm92 = vcmask 261120
    %v93 = vsel %vm92, %v88, 0
    %95 = vmatprep.subr.mxu0 0.0
    %96 = vmatpush1.msra.mxu0 %v45
    %97 = vmatprep.subr.mxu0 0.0
    %98 = vmatpush1.msra.mxu0 %v44
    %99 = vmatprep.subr.mxu0 0.0
    %100 = vmatpush1.msra.mxu0 %v43
    %101 = vmatprep.subr.mxu0 0.0
    %102 = vmatpush1.msra.mxu0 %v42
    %103 = vmatprep.subr.mxu0 0.0
    %104 = vmatpush1.msra.mxu0 %v41
    %105 = vmatprep.subr.mxu0 0.0
    %106 = vmatpush1.msra.mxu0 %v40
    %107 = vmatprep.subr.mxu0 0.0
    %108 = vmatpush1.msra.mxu0 %v39
    %109 = vmatprep.subr.mxu0 0.0
    %110 = vmatpush1.msra.mxu0 %v38
    %111 = vmatprep.subr.mxu0 0.0
    %112 = vmatpush1.msra.mxu0 %v37
    %113 = vmatprep.subr.mxu0 0.0
    %114 = vmatpush1.msra.mxu0 %v36
    %115 = vmatprep.subr.mxu0 0.0
    %116 = vmatpush1.msra.mxu0 %v35
    %117 = vmatprep.subr.mxu0 0.0
    %118 = vmatpush1.msra.mxu0 %v34
    %119 = vmatprep.subr.mxu0 0.0
    %120 = vmatpush1.msra.mxu0 %v33
    %121 = vmatprep.subr.mxu0 0.0
    %122 = vmatpush1.msra.mxu0 %v32
    %123 = vmatprep.subr.mxu0 0.0
    %124 = vmatpush1.msra.mxu0 %v31
    %125 = vmatprep.subr.mxu0 0.0
    %126 = vmatpush1.msra.mxu0 %v30
    %127 = vmatprep.subr.mxu0 0.0
    %128 = vmatpush2.msra.mxu0 %v61
    %129 = vmatprep.subr.mxu0 0.0
    %130 = vmatpush2.msra.mxu0 %v60
    %131 = vmatprep.subr.mxu0 0.0
    %132 = vmatpush2.msra.mxu0 %v59
    %133 = vmatprep.subr.mxu0 0.0
    %134 = vmatpush2.msra.mxu0 %v58
    %135 = vmatprep.subr.mxu0 0.0
    %136 = vmatpush2.msra.mxu0 %v57
    %137 = vmatprep.subr.mxu0 0.0
    %138 = vmatpush2.msra.mxu0 %v56
    %139 = vmatprep.subr.mxu0 0.0
    %140 = vmatpush2.msra.mxu0 %v55
    %141 = vmatprep.subr.mxu0 0.0
    %142 = vmatpush2.msra.mxu0 %v54
    %143 = vmatprep.subr.mxu0 0.0
    %144 = vmatpush2.msra.mxu0 %v53
    %145 = vmatprep.subr.mxu0 0.0
    %146 = vmatpush2.msra.mxu0 %v52
    %147 = vmatprep.subr.mxu0 0.0
    %148 = vmatpush2.msra.mxu0 %v51
    %149 = vmatprep.subr.mxu0 0.0
    %150 = vmatpush2.msra.mxu0 %v50
    %151 = vmatprep.subr.mxu0 0.0
    %152 = vmatpush2.msra.mxu0 %v49
    %153 = vmatprep.subr.mxu0 0.0
    %154 = vmatpush2.msra.mxu0 %v48
    %155 = vmatprep.subr.mxu0 0.0
    %156 = vmatpush2.msra.mxu0 %v47
    %157 = vmatprep.subr.mxu0 0.0
    %158 = vmatpush2.msra.mxu0 %v46
    %159 = vmatprep.mubr.f32.mxu0 %v89
    %160 = vmatmul.mubr.f32.gmra.mxu0 %v81
    %v161 = vpop.f32.mrf.mxu0
    %v162 = vadd.f32 %v71, %v161
    %v163 = vpop.f32.mrf.mxu0
    %164 = vdwg.mxu0
    %165 = vmatprep.subr.mxu0 0.0
    %166 = vmatpush1.msra.mxu0 0.0
    %167 = vmatprep.subr.mxu0 0.0
    %168 = vmatpush1.msra.mxu0 0.0
    %169 = vmatprep.subr.mxu0 0.0
    %170 = vmatpush1.msra.mxu0 0.0
    %171 = vmatprep.subr.mxu0 0.0
    %172 = vmatpush1.msra.mxu0 0.0
    %173 = vmatprep.subr.mxu0 0.0
    %174 = vmatpush1.msra.mxu0 0.0
    %175 = vmatprep.subr.mxu0 0.0
    %176 = vmatpush1.msra.mxu0 0.0
    %177 = vmatprep.subr.mxu0 0.0
    %178 = vmatpush1.msra.mxu0 0.0
    %179 = vmatprep.subr.mxu0 0.0
    %180 = vmatpush1.msra.mxu0 0.0
    %181 = vmatprep.subr.mxu0 0.0
    %182 = vmatpush1.msra.mxu0 0.0
    %183 = vmatprep.subr.mxu0 0.0
    %184 = vmatpush1.msra.mxu0 0.0
    %185 = vmatprep.subr.mxu0 0.0
    %186 = vmatpush1.msra.mxu0 0.0
    %187 = vmatprep.subr.mxu0 0.0
    %188 = vmatpush1.msra.mxu0 0.0
    %189 = vmatprep.subr.mxu0 0.0
    %190 = vmatpush1.msra.mxu0 %v65
    %191 = vmatprep.subr.mxu0 0.0
    %192 = vmatpush1.msra.mxu0 %v64
    %193 = vmatprep.subr.mxu0 0.0
    %194 = vmatpush1.msra.mxu0 %v63
    %195 = vmatprep.subr.mxu0 0.0
    %196 = vmatpush1.msra.mxu0 %v62
    %197 = vmatprep.subr.mxu0 0.0
    %198 = vmatpush2.msra.mxu0 0.0
    %199 = vmatprep.subr.mxu0 0.0
    %200 = vmatpush2.msra.mxu0 0.0
    %201 = vmatprep.subr.mxu0 0.0
    %202 = vmatpush2.msra.mxu0 0.0
    %203 = vmatprep.subr.mxu0 0.0
    %204 = vmatpush2.msra.mxu0 0.0
    %205 = vmatprep.subr.mxu0 0.0
    %206 = vmatpush2.msra.mxu0 0.0
    %207 = vmatprep.subr.mxu0 0.0
    %208 = vmatpush2.msra.mxu0 0.0
    %209 = vmatprep.subr.mxu0 0.0
    %210 = vmatpush2.msra.mxu0 0.0
    %211 = vmatprep.subr.mxu0 0.0
    %212 = vmatpush2.msra.mxu0 0.0
    %213 = vmatprep.subr.mxu0 0.0
    %214 = vmatpush2.msra.mxu0 0.0
    %215 = vmatprep.subr.mxu0 0.0
    %216 = vmatpush2.msra.mxu0 0.0
    %217 = vmatprep.subr.mxu0 0.0
    %218 = vmatpush2.msra.mxu0 0.0
    %219 = vmatprep.subr.mxu0 0.0
    %220 = vmatpush2.msra.mxu0 0.0
    %221 = vmatprep.subr.mxu0 0.0
    %222 = vmatpush2.msra.mxu0 0.0
    %223 = vmatprep.subr.mxu0 0.0
    %224 = vmatpush2.msra.mxu0 0.0
    %225 = vmatprep.subr.mxu0 0.0
    %226 = vmatpush2.msra.mxu0 0.0
    %227 = vmatprep.subr.mxu0 0.0
    %228 = vmatpush2.msra.mxu0 0.0
    %229 = vmatprep.mubr.f32.mxu0 0.0
    %230 = vmatmul.mubr.f32.gmra.mxu0 %v93
    %v231 = vpop.f32.mrf.mxu0
    %v232 = vadd.f32 %v162, %v231
    %v233 = vpop.f32.mrf.mxu0
    %234 = vdwg.mxu0
    %v235 = vmax.f32 %v232, 3.0
    %v236 = vmin.f32 %v235, 4.0
    %vm237 = vcmask 320512
    %238 = vst.msk [vmem:[#allocation5] sm:$0x3] %vm237, %v236
    // Predicated region
    $region18: #{forward.1} parent=1 // pred_check
      _
    $region19: #{forward.1} parent=1 // pred_check_branch
      %240 = sbr.rel (0) target = $region21
    $region20: #{forward.1} parent=1 // pred_region
      %s242 = ssub.s32 32, 32
      %243 = vsyncadd [#allocation4], %s242
      %s245 = sshll.u32 [#allocation5], 4
      %s246 = int_to_ptr.vmem [resolvable:$true] %s245
      %248 = dma.vmem_to_hbm [thread:$0]  %s246, 32, %s3, [#allocation4]
    $region21: #{forward.1} parent=1 // pred_fallthru
      _
    // Predicated region
    $region22: #{forward.1} parent=1 // pred_check
      _
    $region23: #{forward.1} parent=1 // pred_check_branch
      %250 = sbr.rel (0) target = $region25
    $region24: #{forward.1} parent=1 // pred_region
      %251 = dma.done [#allocation4], 32
    $region25: #{forward.1} parent=1 // pred_fallthru
      _
    %252 = vsyncpa [#allocation3], 1
    %253 = vsyncpa [#allocation4], 1

</llo_original>
